<compile_context>
chip_gen: v7x
topology: tpu7x:2x2x1
jax: 0.10.0
libtpu: 0.0.40
codegen_flags: <defaults>
</compile_context>

<pallas_src>
import functools

import jax
import jax.numpy as jnp
from jax.experimental import pallas as pl
from jax.experimental.pallas import tpu as pltpu


def _normalize(x, *, eps, inv_n, inv_nm1):
    # x: (bt, C, HW) float32.  Per-sample mean and unbiased std (torch.std
    # default, Bessel N-1).  Two-pass for numerical robustness; the centered
    # residual d is reused for the normalize (no extra sweep).
    s1 = jnp.sum(x, axis=(1, 2), keepdims=True)              # (bt, 1, 1)
    mean = s1 * inv_n
    d = x - mean
    var = jnp.sum(d * d, axis=(1, 2), keepdims=True) * inv_nm1
    std = jnp.sqrt(jnp.maximum(var, 0.0))
    inv = 1.0 / (std + eps)                                  # tiny exact reciprocal
    return d * inv


def _ln_affine_kernel(x_ref, g_ref, b_ref, o_ref, *, eps, inv_n, inv_nm1):
    x = x_ref[...].astype(jnp.float32)                       # (bt, C, HW)
    xn = _normalize(x, eps=eps, inv_n=inv_n, inv_nm1=inv_nm1)
    g = g_ref[...].astype(jnp.float32)                       # (1, C, 1)
    b = b_ref[...].astype(jnp.float32)                       # (1, C, 1)
    o_ref[...] = (xn * g + b).astype(o_ref.dtype)


def _ln_plain_kernel(x_ref, o_ref, *, eps, inv_n, inv_nm1):
    x = x_ref[...].astype(jnp.float32)
    xn = _normalize(x, eps=eps, inv_n=inv_n, inv_nm1=inv_nm1)
    o_ref[...] = xn.astype(o_ref.dtype)


def layer_norm(x, gamma=None, beta=None, *, eps=1e-5, affine=True):
    """MUNIT LayerNorm forward.  x: (B, C, H, W), any float dtype (stats in f32)."""
    B, C, H, W = x.shape
    HW = H * W
    N = C * HW
    assert N > 1, "unbiased std needs at least 2 elements per sample"

    x3 = x.reshape(B, C, HW)               # contiguous view-style reshape, no pad
    itemsize = jnp.dtype(x.dtype).itemsize
    sample_bytes = C * HW * itemsize

    # ~4 MiB of input per grid step amortizes the fixed per-step cost (matters
    # most on v7x's ~3.2 TB/s HBM) while staying comfortable on v5e/v6e.
    target_bytes = 4 * 1024 * 1024
    bt = max(1, min(B, target_bytes // max(sample_bytes, 1)))
    # Keep >= 2 grid steps so the 'parallel' batch axis can be sharded across
    # both TensorCores (v7x) and input/output DMAs overlap across steps.
    if B >= 2:
        bt = min(bt, max(1, B // 2))

    # VMEM footprint: double-buffered in/out blocks (physically padded to
    # (8,128) tiles) plus ~3 full-block f32 temporaries inside the kernel.
    Cp = -(-C // 8) * 8
    HWp = -(-HW // 128) * 128

    def _est_vmem(bt_):
        blk = bt_ * Cp * HWp
        return 4 * blk * itemsize + 3 * blk * 4 + (1 << 20)

    vmem_budget = 40 * 1024 * 1024          # headroom under v7x's 64 MiB physical
    while bt > 1 and _est_vmem(bt) > vmem_budget:
        bt -= 1
    # TODO(synk): if a single sample still exceeds the budget (huge images on
    # v7x), switch to an HW-tiled two-pass layout (accumulate sums over an
    # 'arbitrary' grid axis, then a second normalize sweep).

    grid = (pl.cdiv(B, bt),)                # uneven tail handled by Pallas padding

    cparams = {"dimension_semantics": ("parallel",)}
    est = _est_vmem(bt)
    if est > 12 * 1024 * 1024:
        # v5e default scoped VMEM is 16 MiB (v6e/v7x: 32 MiB); raise it whenever
        # the real footprint (incl. f32 temps) gets close, cap under 64 MiB.
        cparams["vmem_limit_bytes"] = int(
            min(max(est, 16 * 1024 * 1024), 48 * 1024 * 1024))

    kw = dict(eps=float(eps), inv_n=1.0 / N, inv_nm1=1.0 / (N - 1))
    x_spec = pl.BlockSpec((bt, C, HW), lambda i: (i, 0, 0))
    out_shape = jax.ShapeDtypeStruct((B, C, HW), x.dtype)

    if affine:
        g_r = gamma.astype(jnp.float32).reshape(1, C, 1)    # tiny per-channel refs
        b_r = beta.astype(jnp.float32).reshape(1, C, 1)
        p_spec = pl.BlockSpec((1, C, 1), lambda i: (0, 0, 0))
        out = pl.pallas_call(
            functools.partial(_ln_affine_kernel, **kw),
            out_shape=out_shape,
            grid_spec=pltpu.PrefetchScalarGridSpec(
                num_scalar_prefetch=0,
                grid=grid,
                in_specs=[x_spec, p_spec, p_spec],
                out_specs=x_spec,
            ),
            compiler_params=pltpu.CompilerParams(**cparams),
        )(x3, g_r, b_r)
    else:
        out = pl.pallas_call(
            functools.partial(_ln_plain_kernel, **kw),
            out_shape=out_shape,
            grid_spec=pltpu.PrefetchScalarGridSpec(
                num_scalar_prefetch=0,
                grid=grid,
                in_specs=[x_spec],
                out_specs=x_spec,
            ),
            compiler_params=pltpu.CompilerParams(**cparams),
        )(x3)

    return out.reshape(B, C, H, W)


def layer_norm_ref(x, gamma, beta, eps=1e-5):
    B = x.shape[0]
    flat = x.reshape(B, -1)
    mean = flat.mean(axis=1).reshape(B, 1, 1, 1)
    var = jnp.sum((flat - flat.mean(axis=1, keepdims=True)) ** 2, axis=1) / (
        flat.shape[1] - 1)
    std = jnp.sqrt(var).reshape(B, 1, 1, 1)
    xn = (x - mean) / (std + eps)
    return xn * gamma.reshape(1, -1, 1, 1) + beta.reshape(1, -1, 1, 1)


if __name__ == "__main__":
    key = jax.random.PRNGKey(0)
    kx, kg = jax.random.split(key)

    B, C, H, W = 2, 4, 16, 16
    x = jax.random.normal(kx, (B, C, H, W), dtype=jnp.float32)
    # Parameters as in the module __init__: gamma ~ U[0,1), beta = zeros.
    gamma = jax.random.uniform(kg, (C,), dtype=jnp.float32)
    beta = jnp.zeros((C,), dtype=jnp.float32)

    out = layer_norm(x, gamma, beta, eps=1e-5, affine=True)
    out = jax.block_until_ready(out)

    ref = layer_norm_ref(x, gamma, beta, eps=1e-5)
    assert out.shape == (B, C, H, W)
    assert jnp.allclose(out, ref, atol=1e-5, rtol=1e-5), (
        float(jnp.max(jnp.abs(out - ref))))

    # Non-affine path: no gamma/beta refs are allocated or DMA'd at all.
    out2 = jax.block_until_ready(layer_norm(x, eps=1e-5, affine=False))
    flat = x.reshape(B, -1)
    mean = flat.mean(axis=1).reshape(B, 1, 1, 1)
    std = jnp.sqrt(
        jnp.sum((flat - flat.mean(axis=1, keepdims=True)) ** 2, axis=1)
        / (flat.shape[1] - 1)).reshape(B, 1, 1, 1)
    ref2 = (x - mean) / (std + 1e-5)
    assert jnp.allclose(out2, ref2, atol=1e-5, rtol=1e-5), (
        float(jnp.max(jnp.abs(out2 - ref2))))

    print("KERNEL_OK")
</pallas_src>

<mosaic_0001>
module attributes {stable_mosaic.version = 11 : i64} {
  func.func @_ln_affine_kernel(%arg0: i32, %arg1: memref<1x4x256xf32, #tpu.memory_space<vmem>>, %arg2: memref<1x4x1xf32, #tpu.memory_space<vmem>>, %arg3: memref<1x4x1xf32, #tpu.memory_space<vmem>>, %arg4: memref<1x4x256xf32, #tpu.memory_space<vmem>>) attributes {dimension_semantics = [#tpu.dimension_semantics<parallel>], iteration_bounds = array<i64: 2>, scalar_prefetch = 0 : i64, scratch_operands = 0 : i64, tpu.core_type = #tpu.core_type<tc>, window_params = [{transform_indices = @transform_0, window_bounds = array<i64: 1, 4, 256>}, {pipeline_mode = #tpu.pipeline_mode<synchronous>, transform_indices = @transform_1, window_bounds = array<i64: 1, 4, 1>}, {pipeline_mode = #tpu.pipeline_mode<synchronous>, transform_indices = @transform_2, window_bounds = array<i64: 1, 4, 1>}, {transform_indices = @transform_3, window_bounds = array<i64: 1, 4, 256>}]} {
    %c0 = arith.constant 0 : index
    %c0_0 = arith.constant 0 : index
    %c0_1 = arith.constant 0 : index
    %0 = vector.load %arg1[%c0, %c0_0, %c0_1] : memref<1x4x256xf32, #tpu.memory_space<vmem>>, vector<1x4x256xf32>
    %cst = arith.constant dense<0.000000e+00> : vector<1xf32>
    %1 = vector.multi_reduction <add>, %0, %cst [1, 2] : vector<1x4x256xf32> to vector<1xf32>
    %2 = vector.shape_cast %1 : vector<1xf32> to vector<1x1x1xf32>
    %cst_2 = arith.constant 9.765625E-4 : f32
    %3 = vector.broadcast %cst_2 : f32 to vector<1x1x1xf32>
    %4 = arith.mulf %2, %3 : vector<1x1x1xf32>
    %5 = vector.broadcast %4 : vector<1x1x1xf32> to vector<1x4x256xf32>
    %6 = arith.subf %0, %5 : vector<1x4x256xf32>
    %7 = arith.mulf %6, %6 : vector<1x4x256xf32>
    %cst_3 = arith.constant dense<0.000000e+00> : vector<1xf32>
    %8 = vector.multi_reduction <add>, %7, %cst_3 [1, 2] : vector<1x4x256xf32> to vector<1xf32>
    %9 = vector.shape_cast %8 : vector<1xf32> to vector<1x1x1xf32>
    %cst_4 = arith.constant 9.77517105E-4 : f32
    %10 = vector.broadcast %cst_4 : f32 to vector<1x1x1xf32>
    %11 = arith.mulf %9, %10 : vector<1x1x1xf32>
    %cst_5 = arith.constant 0.000000e+00 : f32
    %12 = vector.broadcast %cst_5 : f32 to vector<1x1x1xf32>
    %13 = arith.maximumf %11, %12 : vector<1x1x1xf32>
    %14 = math.sqrt %13 : vector<1x1x1xf32>
    %cst_6 = arith.constant 9.99999974E-6 : f32
    %15 = vector.broadcast %cst_6 : f32 to vector<1x1x1xf32>
    %16 = arith.addf %14, %15 : vector<1x1x1xf32>
    %cst_7 = arith.constant 1.000000e+00 : f32
    %17 = vector.broadcast %cst_7 : f32 to vector<1x1x1xf32>
    %18 = arith.divf %17, %16 : vector<1x1x1xf32>
    %19 = vector.broadcast %18 : vector<1x1x1xf32> to vector<1x4x256xf32>
    %20 = arith.mulf %6, %19 : vector<1x4x256xf32>
    %c0_8 = arith.constant 0 : index
    %c0_9 = arith.constant 0 : index
    %c0_10 = arith.constant 0 : index
    %21 = vector.load %arg2[%c0_8, %c0_9, %c0_10] : memref<1x4x1xf32, #tpu.memory_space<vmem>>, vector<1x4x1xf32>
    %c0_11 = arith.constant 0 : index
    %c0_12 = arith.constant 0 : index
    %c0_13 = arith.constant 0 : index
    %22 = vector.load %arg3[%c0_11, %c0_12, %c0_13] : memref<1x4x1xf32, #tpu.memory_space<vmem>>, vector<1x4x1xf32>
    %23 = vector.broadcast %21 : vector<1x4x1xf32> to vector<1x4x256xf32>
    %24 = arith.mulf %20, %23 : vector<1x4x256xf32>
    %25 = vector.broadcast %22 : vector<1x4x1xf32> to vector<1x4x256xf32>
    %26 = arith.addf %24, %25 : vector<1x4x256xf32>
    %c0_14 = arith.constant 0 : index
    %c0_15 = arith.constant 0 : index
    %c0_16 = arith.constant 0 : index
    %27 = vector.load %arg4[%c0_14, %c0_15, %c0_16] : memref<1x4x256xf32, #tpu.memory_space<vmem>>, vector<1x4x256xf32>
    tpu.vector_store %arg4[%c0_14, %c0_15, %c0_16], %26 {strides = array<i32>} : memref<1x4x256xf32, #tpu.memory_space<vmem>>, vector<1x4x256xf32>,
    return
  }
  func.func @transform_0(%arg0: i32) -> (i32, i32, i32) {
    %c0_i32 = arith.constant 0 : i32
    %c0_i32_0 = arith.constant 0 : i32
    %c0_i32_1 = arith.constant 0 : i32
    return %arg0, %c0_i32, %c0_i32_0 : i32, i32, i32
  }
  func.func @transform_1(%arg0: i32) -> (i32, i32, i32) {
    %c0_i32 = arith.constant 0 : i32
    %c0_i32_0 = arith.constant 0 : i32
    %c0_i32_1 = arith.constant 0 : i32
    %c0_i32_2 = arith.constant 0 : i32
    return %c0_i32, %c0_i32_0, %c0_i32_1 : i32, i32, i32
  }
  func.func @transform_2(%arg0: i32) -> (i32, i32, i32) {
    %c0_i32 = arith.constant 0 : i32
    %c0_i32_0 = arith.constant 0 : i32
    %c0_i32_1 = arith.constant 0 : i32
    %c0_i32_2 = arith.constant 0 : i32
    return %c0_i32, %c0_i32_0, %c0_i32_1 : i32, i32, i32
  }
  func.func @transform_3(%arg0: i32) -> (i32, i32, i32) {
    %c0_i32 = arith.constant 0 : i32
    %c0_i32_0 = arith.constant 0 : i32
    %c0_i32_1 = arith.constant 0 : i32
    return %arg0, %c0_i32, %c0_i32_0 : i32, i32, i32
  }
}

</mosaic_0001>

<llo_original>
// kernel: tpu_custom_call.1
$region0: #{tpu_custom_call.1}
  #allocation0 [shape = 'u32[]', space=smem, size = 0x4, offset = 0x4, fixed_abs, tag = 'smem constant byte address 0x4 - core index']
  #allocation1 [shape = 'u32[144,128]{1,0:T(1,128)}', space=vmem, size = 0x12000, scoped, tag = 'internal scratch']
  %s0 = inlined_call_operand.hbm [shape: f32[2,4,256], index: 0, kind: input, shape index: {}]
  %s1 = inlined_call_operand.vmem [shape: f32[1,4,1], index: 1, kind: input, shape index: {}]
  %s2 = inlined_call_operand.vmem [shape: f32[1,4,1], index: 2, kind: input, shape index: {}]
  %s3 = inlined_call_operand.hbm [shape: f32[2,4,256], index: 3, kind: output, shape index: {}]
  %s4 = sld [smem:[#allocation0]]
  $region49: #{tpu_custom_call.1} parent=0
    _
  %s6 = ssub.s32 1, %s4
  %s7 = scalar_select 0, %s6, %s4
  $region1: #{tpu_custom_call.1} parent=0
    #allocation2 [shape = 'u8[8192]{0}', space=vmem, size = 0x2000, scoped, tag = 'input window, operand 0']
    #allocation3 [shape = 's32[2]{0}', space=sflag, size = 0x8, scoped, tag = 'scoped memory for tpu_custom_call.1']
    #allocation4 [shape = 's32[2]{0}', space=sflag, size = 0x8, scoped, tag = 'scoped memory for tpu_custom_call.1']
    #allocation5 [shape = 'u8[8192]{0}', space=vmem, size = 0x2000, scoped, tag = 'output window, operand 0']
    %8 = vsyncpa [#allocation3], 0
    %s9 = scalar_lea.sflag [#allocation3], 1
    %10 = vsyncpa %s9, 0
    %11 = vsyncpa [#allocation4], 0
    %s12 = scalar_lea.sflag [#allocation4], 1
    %13 = vsyncpa %s12, 0
    loop: start=0, step=1, limit=4
    $region2: #{tpu_custom_call.1} parent=1 // loop_pre_header
      _
    $region3: #{tpu_custom_call.1} parent=1 // loop_header
      %s15 = sphi 0, %s19
      %p16 = scmp.ge.s32.totalorder %s15, 4
      %s25 = sphi 0, %s27
      %s28 = sphi 0, %s25
      %s29 = sphi 0, %s28
      %s45 = sphi 0, %s29
      %s49 = sphi 0, %s49
      %s51 = sphi 0, %s49
      %s52 = sphi 0, %s51
      %s66 = sphi 0, %s52
      %s70 = sphi 0, %s70
      %s72 = sphi 0, %s70
      %s73 = sphi 0, %s72
      %s87 = sphi 0, %s73
      %s93 = sphi 0, %s95
      %s96 = sphi 0, %s93
      %s97 = sphi 0, %s96
      %s113 = sphi 0, %s97
    $region4: #{tpu_custom_call.1} parent=1 // loop_header_branch
      %18 = sbr.rel (%p16) target = $region8
    $region5: #{tpu_custom_call.1} parent=1 // loop_body
      %s20 = ssub.s32 %s15, 1
      %s21 = ssub.s32 %s15, 2
      %s22 = sadd.s32 %s15, 1
      %s23 = ssub.s32 %s15, %s22
      %p24 = scmp.eq.s32.totalorder %s23, 0
      %s26 = sadd.s32 %s25, 1
      %s27 = scalar_select %p24, %s25, %s26
      %p30 = pneg %p24
      %p31 = scmp.eq.s32.totalorder %s15, 1
      %p32 = por %p30, %p31
      %p33 = scmp.ne.s32.totalorder %s25, %s28
      %p34 = scmp.eq.s32.totalorder %s15, 0
      %p35 = por %p33, %p34
      %p36 = scmp.ne.s32.totalorder %s25, %s28
      %p37 = scmp.eq.s32.totalorder %s20, 1
      %p38 = por %p36, %p37
      %p39 = scmp.ne.s32.totalorder %s28, %s29
      %p40 = scmp.eq.s32.totalorder %s20, 0
      %p41 = por %p39, %p40
      %p42 = scmp.ne.s32.totalorder %s28, %s29
      %p43 = scmp.eq.s32.totalorder %s21, 1
      %p44 = por %p42, %p43
      %p46 = scmp.ne.s32.totalorder %s29, %s45
      %p47 = scmp.eq.s32.totalorder %s21, 0
      %p48 = por %p46, %p47
      %s50 = sadd.s32 %s49, 1
      %p53 = scmp.eq.s32.totalorder %s15, 1
      %p54 = scmp.ne.s32.totalorder %s49, %s51
      %p55 = scmp.eq.s32.totalorder %s15, 0
      %p56 = por %p54, %p55
      %p57 = scmp.ne.s32.totalorder %s49, %s51
      %p58 = scmp.eq.s32.totalorder %s20, 1
      %p59 = por %p57, %p58
      %p60 = scmp.ne.s32.totalorder %s51, %s52
      %p61 = scmp.eq.s32.totalorder %s20, 0
      %p62 = por %p60, %p61
      %p63 = scmp.ne.s32.totalorder %s51, %s52
      %p64 = scmp.eq.s32.totalorder %s21, 1
      %p65 = por %p63, %p64
      %p67 = scmp.ne.s32.totalorder %s52, %s66
      %p68 = scmp.eq.s32.totalorder %s21, 0
      %p69 = por %p67, %p68
      %s71 = sadd.s32 %s70, 1
      %p74 = scmp.eq.s32.totalorder %s15, 1
      %p75 = scmp.ne.s32.totalorder %s70, %s72
      %p76 = scmp.eq.s32.totalorder %s15, 0
      %p77 = por %p75, %p76
      %p78 = scmp.ne.s32.totalorder %s70, %s72
      %p79 = scmp.eq.s32.totalorder %s20, 1
      %p80 = por %p78, %p79
      %p81 = scmp.ne.s32.totalorder %s72, %s73
      %p82 = scmp.eq.s32.totalorder %s20, 0
      %p83 = por %p81, %p82
      %p84 = scmp.ne.s32.totalorder %s72, %s73
      %p85 = scmp.eq.s32.totalorder %s21, 1
      %p86 = por %p84, %p85
      %p88 = scmp.ne.s32.totalorder %s73, %s87
      %p89 = scmp.eq.s32.totalorder %s21, 0
      %p90 = por %p88, %p89
      %s91 = ssub.s32 %s15, %s22
      %p92 = scmp.eq.s32.totalorder %s91, 0
      %s94 = sadd.s32 %s93, 1
      %s95 = scalar_select %p92, %s93, %s94
      %p98 = pneg %p92
      %p99 = scmp.eq.s32.totalorder %s15, 1
      %p100 = por %p98, %p99
      %p101 = scmp.ne.s32.totalorder %s93, %s96
      %p102 = scmp.eq.s32.totalorder %s15, 0
      %p103 = por %p101, %p102
      %p104 = scmp.ne.s32.totalorder %s93, %s96
      %p105 = scmp.eq.s32.totalorder %s20, 1
      %p106 = por %p104, %p105
      %p107 = scmp.ne.s32.totalorder %s96, %s97
      %p108 = scmp.eq.s32.totalorder %s20, 0
      %p109 = por %p107, %p108
      %p110 = scmp.ne.s32.totalorder %s96, %s97
      %p111 = scmp.eq.s32.totalorder %s21, 1
      %p112 = por %p110, %p111
      %p114 = scmp.ne.s32.totalorder %s97, %s113
      %p115 = scmp.eq.s32.totalorder %s21, 0
      %p116 = por %p114, %p115
      %p117 = scmp.le.s32.totalorder 1, %s15
      %p118 = scmp.lt.s32.totalorder %s15, 3
      %p119 = pnand %p117, %p118
      %p120 = pneg %p119
      // Predicated region
      $region9: #{tpu_custom_call.1} parent=5 // pred_check
        _
      $region10: #{tpu_custom_call.1} parent=5 // pred_check_branch
        %122 = sbr.rel (%p119) target = $region12
      $region11: #{tpu_custom_call.1} parent=5 // pred_region
        %s123 = ssub.s32 %s15, 1
        // Predicated region
        $region13: #{tpu_custom_call.1} parent=11 // pred_check
          %p124 = pneg %p62
        $region14: #{tpu_custom_call.1} parent=11 // pred_check_branch
          %126 = sbr.rel (%p124) target = $region16
        $region15: #{tpu_custom_call.1} parent=11 // pred_region
          _
        $region16: #{tpu_custom_call.1} parent=11 // pred_fallthru
          _
        // Predicated region
        $region17: #{tpu_custom_call.1} parent=11 // pred_check
          %p127 = pneg %p83
        $region18: #{tpu_custom_call.1} parent=11 // pred_check_branch
          %129 = sbr.rel (%p127) target = $region20
        $region19: #{tpu_custom_call.1} parent=11 // pred_region
          _
        $region20: #{tpu_custom_call.1} parent=11 // pred_fallthru
          _
      $region12: #{tpu_custom_call.1} parent=5 // pred_fallthru
        _
      %p130 = scmp.lt.s32.totalorder %s15, 2
      // Predicated region
      $region21: #{tpu_custom_call.1} parent=5 // pred_check
        %p131 = pneg %p130
      $region22: #{tpu_custom_call.1} parent=5 // pred_check_branch
        %133 = sbr.rel (%p131) target = $region24
      $region23: #{tpu_custom_call.1} parent=5 // pred_region
        // Predicated region
        $region25: #{tpu_custom_call.1} parent=23 // pred_check
          %p134 = pneg %p35
        $region26: #{tpu_custom_call.1} parent=23 // pred_check_branch
          %136 = sbr.rel (%p134) target = $region28
        $region27: #{tpu_custom_call.1} parent=23 // pred_region
          %s137 = sand.u32 %s25, 1
          %s138 = scalar_lea.sflag [#allocation3], %s137
          %s139 = sand.u32 %s25, 1
          %s140 = smul.addr %s139, 8
          %s141 = scalar_lea.vmem [#allocation2], %s140
          %s143 = ssub.s32 128, 128
          %144 = vsyncadd %s138, %s143
          %s145 = smul.addr %s15, 2
          %s146 = smul.addr %s145, 64
          %s147 = scalar_lea.hbm %s0, %s146
          %s149 = sshll.u32 %s141, 4
          %s150 = int_to_ptr.vmem [resolvable:$true] %s149
          %152 = dma.hbm_to_vmem [thread:$0]  %s147, 128, %s150, %s138
        $region28: #{tpu_custom_call.1} parent=23 // pred_fallthru
          _
      $region24: #{tpu_custom_call.1} parent=5 // pred_fallthru
        _
      %p153 = scmp.le.s32.totalorder 1, %s15
      %p154 = scmp.lt.s32.totalorder %s15, 3
      %p155 = pnand %p153, %p154
      %p156 = pneg %p155
      // Predicated region
      $region29: #{tpu_custom_call.1} parent=5 // pred_check
        _
      $region30: #{tpu_custom_call.1} parent=5 // pred_check_branch
        %158 = sbr.rel (%p155) target = $region32
      $region31: #{tpu_custom_call.1} parent=5 // pred_region
        %s159 = ssub.s32 %s15, 1
        %s160 = sand.u32 %s28, 1
        %s161 = scalar_lea.sflag [#allocation3], %s160
        %s162 = sand.u32 %s28, 1
        %s163 = smul.addr %s162, 8
        %s164 = scalar_lea.vmem [#allocation2], %s163
        // Predicated region
        $region33: #{tpu_custom_call.1} parent=31 // pred_check
          %p165 = pneg %p41
        $region34: #{tpu_custom_call.1} parent=31 // pred_check_branch
          %167 = sbr.rel (%p165) target = $region36
        $region35: #{tpu_custom_call.1} parent=31 // pred_region
          %168 = dma.done %s161, 128
        $region36: #{tpu_custom_call.1} parent=31 // pred_fallthru
          _
        %s169 = sand.u32 %s28, 1
        %s170 = scalar_lea.sflag [#allocation3], %s169
        %s171 = sand.u32 %s28, 1
        %s172 = smul.addr %s171, 8
        %s173 = scalar_lea.vmem [#allocation2], %s172
        %p174 = pneg %p41
        %p175 = pneg %p38
        %p176 = pneg %p62
        %p177 = pneg %p59
        %p178 = pneg %p83
        %p179 = pneg %p80
        %p180 = pneg %p109
        %p181 = pneg %p106
        %s182 = sand.u32 %s96, 1
        %s183 = scalar_lea.sflag [#allocation4], %s182
        %s184 = sand.u32 %s96, 1
        %s185 = smul.addr %s184, 8
        %s186 = scalar_lea.vmem [#allocation5], %s185
        %v187 = vld [vmem:[%s164] sm:$0xff]
        %v189 = vcombine.high %v187, %v187
        %vm191 = vcmask 1043456
        %v192 = vsel %vm191, %v187, 0.0
        %v193 = vsel %vm191, %v189, 0.0
        %v194 = vadd.f32 %v192, %v193
        %195 = vadd.xlane.f32.xlu0 %v194
        %v196 = vpop.xlane.xlu0 %195
        %v197 = vrot.slane %v196, 4
        %v198 = vadd.f32 %v196, %v197
        %v199 = vrot.slane %v198, 2
        %v200 = vadd.f32 %v198, %v199
        %v201 = vrot.slane %v200, 1
        %v202 = vadd.f32 %v200, %v201
        %v203 = vmul.f32 %v202, 0.0009765625
        %v204 = vsub.f32 %v187, %v203
        %v205 = vmul.f32 %v204, %v204
        %v207 = vcombine.high %v205, %v205
        %v209 = vsel %vm191, %v205, 0.0
        %v210 = vsel %vm191, %v207, 0.0
        %v211 = vadd.f32 %v209, %v210
        %212 = vadd.xlane.f32.xlu0 %v211
        %v213 = vpop.xlane.xlu0 %212
        %v214 = vrot.slane %v213, 4
        %v215 = vadd.f32 %v213, %v214
        %v216 = vrot.slane %v215, 2
        %v217 = vadd.f32 %v215, %v216
        %v218 = vrot.slane %v217, 1
        %v219 = vadd.f32 %v217, %v218
        %v220 = vmul.f32 %v219, 0.0009775171
        %v221 = vmax.f32 %v220, 0.0
        %v222 = vrsqrt.pop %v221
        %v223 = vmul.f32 %v221, %v222
        %vm224 = vcmp.eq.f32.partialorder %v221, inf
        %v225 = vsel %vm224, %v221, %v223
        %vm226 = vcmp.eq.f32.partialorder %v221, 0.0
        %v227 = vand.u32 %v221, 2147483648
        %v228 = vsel %vm226, %v227, %v225
        %v229 = vadd.f32 %v228, 1e-05
        %v230 = vrcp.pop %v229
        %v231 = vmul.f32 1.0, %v230
        %v232 = vmul.f32 %v204, %v231
        %v233 = vld [vmem:[%s1] sm:$0xf]
        %v234 = vld [vmem:[%s2] sm:$0xf]
        %236 = vset.pattern.permute.xlu0 0
        %237 = vperm.xlu0 %236, %v233
        %v238 = vpop.permute.xlu0 %237
        %v240 = vunpack.c.l.s4 839922192
        %v241 = vunpack.c.0.s8 %v240
        %v242 = vlaneseq
        %v243 = vshrl.u32 %v242, 7
        %v244 = vsub.s32 %v241, %v243
        %v245 = vrot.slane %v238, %v244
        %v247 = vmul.f32 %v232, %v245
        %249 = vset.pattern.permute.xlu0 0
        %250 = vperm.xlu0 %249, %v234
        %v251 = vpop.permute.xlu0 %250
        %v253 = vunpack.c.l.s4 839922192
        %v254 = vunpack.c.0.s8 %v253
        %v255 = vlaneseq
        %v256 = vshrl.u32 %v255, 7
        %v257 = vsub.s32 %v254, %v256
        %v258 = vrot.slane %v251, %v257
        %v260 = vadd.f32 %v247, %v258
        %261 = vst [vmem:[%s186] sm:$0xff] %v260
        %s262 = sand.u32 %s96, 1
        %s263 = scalar_lea.sflag [#allocation4], %s262
        %s264 = sand.u32 %s96, 1
        %s265 = smul.addr %s264, 8
        %s266 = scalar_lea.vmem [#allocation5], %s265
        // Predicated region
        $region37: #{tpu_custom_call.1} parent=31 // pred_check
          %p267 = pneg %p106
        $region38: #{tpu_custom_call.1} parent=31 // pred_check_branch
          %269 = sbr.rel (%p267) target = $region40
        $region39: #{tpu_custom_call.1} parent=31 // pred_region
          %s271 = ssub.s32 128, 128
          %272 = vsyncadd %s263, %s271
          %s273 = smul.addr %s20, 2
          %s274 = smul.addr %s273, 64
          %s275 = scalar_lea.hbm %s3, %s274
          %s277 = sshll.u32 %s266, 4
          %s278 = int_to_ptr.vmem [resolvable:$true] %s277
          %280 = dma.vmem_to_hbm [thread:$0]  %s278, 128, %s275, %s263
        $region40: #{tpu_custom_call.1} parent=31 // pred_fallthru
          _
      $region32: #{tpu_custom_call.1} parent=5 // pred_fallthru
        _
      %p281 = scmp.le.s32.totalorder 2, %s15
      // Predicated region
      $region41: #{tpu_custom_call.1} parent=5 // pred_check
        %p282 = pneg %p281
      $region42: #{tpu_custom_call.1} parent=5 // pred_check_branch
        %284 = sbr.rel (%p282) target = $region44
      $region43: #{tpu_custom_call.1} parent=5 // pred_region
        %s285 = ssub.s32 %s15, 2
        // Predicated region
        $region45: #{tpu_custom_call.1} parent=43 // pred_check
          %p286 = pneg %p112
        $region46: #{tpu_custom_call.1} parent=43 // pred_check_branch
          %288 = sbr.rel (%p286) target = $region48
        $region47: #{tpu_custom_call.1} parent=43 // pred_region
          %s289 = sand.u32 %s97, 1
          %s290 = scalar_lea.sflag [#allocation4], %s289
          %s291 = sand.u32 %s97, 1
          %s292 = smul.addr %s291, 8
          %s293 = scalar_lea.vmem [#allocation5], %s292
          %294 = dma.done %s290, 128
        $region48: #{tpu_custom_call.1} parent=43 // pred_fallthru
          _
      $region44: #{tpu_custom_call.1} parent=5 // pred_fallthru
        _
    $region6: #{tpu_custom_call.1} parent=1 // loop_footer
      %s19 = sadd.s32 1, %s15
    $region7: #{tpu_custom_call.1} parent=1 // loop_footer_branch
      %14 = sbr.rel target = $region3
    $region8: #{tpu_custom_call.1} parent=1 // loop_exit
      _
    %295 = vsyncpa [#allocation3], 1
    %s296 = scalar_lea.sflag [#allocation3], 1
    %297 = vsyncpa %s296, 1
    %298 = vsyncpa [#allocation4], 1
    %s299 = scalar_lea.sflag [#allocation4], 1
    %300 = vsyncpa %s299, 1

</llo_original>
